<compile_context>
chip_gen: v6e
topology: v6e:2x2x1
jax: 0.10.0
libtpu: 0.0.40
codegen_flags: <defaults>
</compile_context>

<pallas_src>
import functools

import jax
import jax.numpy as jnp
from jax import lax
from jax.experimental import pallas as pl
from jax.experimental.pallas import tpu as pltpu


# ---------------------------------------------------------------------------
# int32 hashing helpers (two's-complement arithmetic == uint32 hashing)
# ---------------------------------------------------------------------------
def _to_i32(c):
    c &= 0xFFFFFFFF
    return c - (1 << 32) if c >= (1 << 31) else c


_M1 = _to_i32(0x7FEB352D)
_M2 = _to_i32(0x846CA68B)
_GOLDEN = _to_i32(0x9E3779B9)


def _srl(v, k):
    # Logical right shift on int32: arithmetic shift, then mask off sign-extension bits.
    return (v >> k) & ((1 << (32 - k)) - 1)


def _mix32(v):
    # lowbias32-style avalanche hash (wrapping int32 arithmetic, 2 int multiplies).
    v = v ^ _srl(v, 16)
    v = v * _M1
    v = v ^ _srl(v, 15)
    v = v * _M2
    v = v ^ _srl(v, 16)
    return v


def _erfinv_f32(x):
    # Giles (2012) single-precision erfinv approximation: only log/sqrt/FMA/where.
    w = -jnp.log((1.0 - x) * (1.0 + x))

    wc = w - 2.5
    p1 = 2.81022636e-08
    p1 = 3.43273939e-07 + p1 * wc
    p1 = -3.5233877e-06 + p1 * wc
    p1 = -4.39150654e-06 + p1 * wc
    p1 = 0.00021858087 + p1 * wc
    p1 = -0.00125372503 + p1 * wc
    p1 = -0.00417768164 + p1 * wc
    p1 = 0.246640727 + p1 * wc
    p1 = 1.50140941 + p1 * wc

    wt = jnp.sqrt(w) - 3.0
    p2 = -0.000200214257
    p2 = 0.000100950558 + p2 * wt
    p2 = 0.00134934322 + p2 * wt
    p2 = -0.00367342844 + p2 * wt
    p2 = 0.00573950773 + p2 * wt
    p2 = -0.0076224613 + p2 * wt
    p2 = 0.00943887047 + p2 * wt
    p2 = 1.00167406 + p2 * wt
    p2 = 2.83297682 + p2 * wt

    return jnp.where(w < 5.0, p1, p2) * x


# ---------------------------------------------------------------------------
# Kernel
# ---------------------------------------------------------------------------
def _gaussian_noise_kernel(seed_ref, x_ref, o_ref, *, std, block_rows, log2w):
    i = pl.program_id(0)
    shape = x_ref.shape  # (block_rows, width)

    # Unique global element index for every element of this tile.
    # width is a power of two -> shift/OR instead of an int32 multiply.
    row = lax.broadcasted_iota(jnp.int32, shape, 0)
    col = lax.broadcasted_iota(jnp.int32, shape, 1)
    idx = ((i * block_rows + row) << log2w) | col

    # Counter-based PRNG: hash(global_index ^ seed*golden) -> 24 uniform bits.
    seed_mix = seed_ref[0] * _GOLDEN  # scalar, hoisted out of the vector path
    h = _mix32(idx ^ seed_mix)
    bits24 = _srl(h, 8)  # in [0, 2^24)

    # Uniform strictly inside (-1, 1), then inverse-CDF -> standard normal.
    u = (bits24.astype(jnp.float32) + 0.5) * (1.0 / (1 << 23)) - 1.0
    z = 1.4142135623730951 * _erfinv_f32(u)

    # Scale once in f32, cast to x's dtype, add natively (bf16 stays bf16).
    o_ref[...] = x_ref[...] + (std * z).astype(x_ref.dtype)


# ---------------------------------------------------------------------------
# Wrapper
# ---------------------------------------------------------------------------
def _pick_width(n):
    for w in (1024, 512, 256, 128):
        if n % w == 0:
            return w, False
    return 128, True  # rare ragged fallback: pad


def gaussian_noise(x, std, seed, *, max_block_bytes=2 << 20):
    orig_shape = x.shape
    n = x.size
    width, needs_pad = _pick_width(n)
    log2w = width.bit_length() - 1

    if needs_pad:
        rows = pl.cdiv(n, width)
        flat = jnp.pad(x.reshape(-1), (0, rows * width - n))
        x2d = flat.reshape(rows, width)
    else:
        rows = n // width
        x2d = x.reshape(rows, width)

    # ~2 MiB per block buffer: double-buffered in+out stays ~8 MiB, comfortably
    # inside scoped VMEM on v5e/v6e/v7x, while amortizing per-step overhead.
    itemsize = jnp.dtype(x.dtype).itemsize
    target_rows = max(8, ((max_block_bytes // (width * itemsize)) // 8) * 8)
    block_rows = rows if rows <= target_rows else target_rows
    grid = (pl.cdiv(rows, block_rows),)

    seed_arr = jnp.asarray([int(seed) & 0x7FFFFFFF], dtype=jnp.int32)

    out2d = pl.pallas_call(
        functools.partial(
            _gaussian_noise_kernel,
            std=float(std),
            block_rows=block_rows,
            log2w=log2w,
        ),
        out_shape=jax.ShapeDtypeStruct((rows, width), x.dtype),
        grid=grid,
        in_specs=[
            pl.BlockSpec(memory_space=pltpu.SMEM),                 # seed scalar
            pl.BlockSpec((block_rows, width), lambda i: (i, 0)),   # x tile
        ],
        out_specs=pl.BlockSpec((block_rows, width), lambda i: (i, 0)),
        compiler_params=pltpu.CompilerParams(
            dimension_semantics=("parallel",),
        ),
    )(seed_arr, x2d)

    if needs_pad:
        return out2d.reshape(-1)[:n].reshape(orig_shape)
    return out2d.reshape(orig_shape)


if __name__ == "__main__":
    key = jax.random.PRNGKey(0)
    std = 0.15

    # 1) Small NCHW input consistent with a conv-net feature map.
    x = jax.random.normal(key, (2, 4, 16, 16), dtype=jnp.float32)
    y = jax.block_until_ready(gaussian_noise(x, std=std, seed=0))
    assert y.shape == x.shape and y.dtype == x.dtype
    diff = y - x
    assert bool(jnp.any(jnp.abs(diff) > 0.0))
    assert float(jnp.max(jnp.abs(diff))) < 10.0 * std
    emp_std = float(jnp.std(diff))
    assert 0.5 * std < emp_std < 1.5 * std

    # 2) Larger activation, small max_block_bytes to exercise the multi-block
    #    pipelined path; tighter statistical check on the noise distribution.
    k2 = jax.random.PRNGKey(1)
    xb = jax.random.normal(k2, (8, 32, 32, 32), dtype=jnp.float32)
    yb = jax.block_until_ready(
        gaussian_noise(xb, std=std, seed=123, max_block_bytes=64 * 1024)
    )
    db = yb - xb
    assert 0.95 * std < float(jnp.std(db)) < 1.05 * std
    assert abs(float(jnp.mean(db))) < 0.005

    # 3) Ragged size (not a multiple of 128) exercising the pad fallback.
    k3 = jax.random.PRNGKey(2)
    xr = jax.random.normal(k3, (3, 5, 7, 11), dtype=jnp.float32)
    yr = jax.block_until_ready(gaussian_noise(xr, std=std, seed=7))
    assert yr.shape == xr.shape
    assert 0.5 * std < float(jnp.std(yr - xr)) < 1.5 * std

    print("KERNEL_OK")
</pallas_src>

<mosaic_0001>
module attributes {stable_mosaic.version = 11 : i64} {
  func.func @_gaussian_noise_kernel(%arg0: i32, %arg1: memref<1xi32, #tpu.memory_space<smem>>, %arg2: memref<2x1024xf32, #tpu.memory_space<vmem>>, %arg3: memref<2x1024xf32, #tpu.memory_space<vmem>>) attributes {dimension_semantics = [#tpu.dimension_semantics<parallel>], iteration_bounds = array<i64: 1>, scalar_prefetch = 0 : i64, scratch_operands = 0 : i64, tpu.core_type = #tpu.core_type<tc>, window_params = [{transform_indices = @transform_0, window_bounds = array<i64: 1>}, {transform_indices = @transform_1, window_bounds = array<i64: 2, 1024>}, {transform_indices = @transform_2, window_bounds = array<i64: 2, 1024>}]} {
    %0 = tpu.iota {dimensions = array<i32: 0>} : vector<2x1024xi32>
    %1 = tpu.iota {dimensions = array<i32: 1>} : vector<2x1024xi32>
    %c2_i32 = arith.constant 2 : i32
    %2 = arith.muli %arg0, %c2_i32 : i32
    %3 = vector.broadcast %2 : i32 to vector<2x1024xi32>
    %4 = arith.addi %3, %0 : vector<2x1024xi32>
    %c10_i32 = arith.constant 10 : i32
    %5 = vector.broadcast %c10_i32 : i32 to vector<2x1024xi32>
    %6 = arith.shli %4, %5 : vector<2x1024xi32>
    %7 = arith.ori %6, %1 : vector<2x1024xi32>
    %c0 = arith.constant 0 : index
    %8 = memref.load %arg1[%c0] : memref<1xi32, #tpu.memory_space<smem>>
    %c-1640531527_i32 = arith.constant -1640531527 : i32
    %9 = arith.muli %8, %c-1640531527_i32 : i32
    %10 = vector.broadcast %9 : i32 to vector<2x1024xi32>
    %11 = arith.xori %7, %10 : vector<2x1024xi32>
    %c16_i32 = arith.constant 16 : i32
    %12 = vector.broadcast %c16_i32 : i32 to vector<2x1024xi32>
    %13 = arith.shrsi %11, %12 : vector<2x1024xi32>
    %c65535_i32 = arith.constant 65535 : i32
    %14 = vector.broadcast %c65535_i32 : i32 to vector<2x1024xi32>
    %15 = arith.andi %13, %14 : vector<2x1024xi32>
    %16 = arith.xori %11, %15 : vector<2x1024xi32>
    %c2146121005_i32 = arith.constant 2146121005 : i32
    %17 = vector.broadcast %c2146121005_i32 : i32 to vector<2x1024xi32>
    %18 = arith.muli %16, %17 : vector<2x1024xi32>
    %c15_i32 = arith.constant 15 : i32
    %19 = vector.broadcast %c15_i32 : i32 to vector<2x1024xi32>
    %20 = arith.shrsi %18, %19 : vector<2x1024xi32>
    %c131071_i32 = arith.constant 131071 : i32
    %21 = vector.broadcast %c131071_i32 : i32 to vector<2x1024xi32>
    %22 = arith.andi %20, %21 : vector<2x1024xi32>
    %23 = arith.xori %18, %22 : vector<2x1024xi32>
    %c-2073254261_i32 = arith.constant -2073254261 : i32
    %24 = vector.broadcast %c-2073254261_i32 : i32 to vector<2x1024xi32>
    %25 = arith.muli %23, %24 : vector<2x1024xi32>
    %c16_i32_0 = arith.constant 16 : i32
    %26 = vector.broadcast %c16_i32_0 : i32 to vector<2x1024xi32>
    %27 = arith.shrsi %25, %26 : vector<2x1024xi32>
    %c65535_i32_1 = arith.constant 65535 : i32
    %28 = vector.broadcast %c65535_i32_1 : i32 to vector<2x1024xi32>
    %29 = arith.andi %27, %28 : vector<2x1024xi32>
    %30 = arith.xori %25, %29 : vector<2x1024xi32>
    %c8_i32 = arith.constant 8 : i32
    %31 = vector.broadcast %c8_i32 : i32 to vector<2x1024xi32>
    %32 = arith.shrsi %30, %31 : vector<2x1024xi32>
    %c16777215_i32 = arith.constant 16777215 : i32
    %33 = vector.broadcast %c16777215_i32 : i32 to vector<2x1024xi32>
    %34 = arith.andi %32, %33 : vector<2x1024xi32>
    %35 = arith.sitofp %34 : vector<2x1024xi32> to vector<2x1024xf32>
    %cst = arith.constant 5.000000e-01 : f32
    %36 = vector.broadcast %cst : f32 to vector<2x1024xf32>
    %37 = arith.addf %35, %36 : vector<2x1024xf32>
    %cst_2 = arith.constant 1.1920929E-7 : f32
    %38 = vector.broadcast %cst_2 : f32 to vector<2x1024xf32>
    %39 = arith.mulf %37, %38 : vector<2x1024xf32>
    %cst_3 = arith.constant 1.000000e+00 : f32
    %40 = vector.broadcast %cst_3 : f32 to vector<2x1024xf32>
    %41 = arith.subf %39, %40 : vector<2x1024xf32>
    %cst_4 = arith.constant 1.000000e+00 : f32
    %42 = vector.broadcast %cst_4 : f32 to vector<2x1024xf32>
    %43 = arith.subf %42, %41 : vector<2x1024xf32>
    %cst_5 = arith.constant 1.000000e+00 : f32
    %44 = vector.broadcast %cst_5 : f32 to vector<2x1024xf32>
    %45 = arith.addf %44, %41 : vector<2x1024xf32>
    %46 = arith.mulf %43, %45 : vector<2x1024xf32>
    %47 = math.log %46 : vector<2x1024xf32>
    %cst_6 = arith.constant 0.000000e+00 : f32
    %48 = vector.broadcast %cst_6 : f32 to vector<2x1024xf32>
    %49 = arith.subf %48, %47 : vector<2x1024xf32>
    %cst_7 = arith.constant 2.500000e+00 : f32
    %50 = vector.broadcast %cst_7 : f32 to vector<2x1024xf32>
    %51 = arith.subf %49, %50 : vector<2x1024xf32>
    %cst_8 = arith.constant 2.81022636E-8 : f32
    %52 = vector.broadcast %cst_8 : f32 to vector<2x1024xf32>
    %53 = arith.mulf %52, %51 : vector<2x1024xf32>
    %cst_9 = arith.constant 3.43273939E-7 : f32
    %54 = vector.broadcast %cst_9 : f32 to vector<2x1024xf32>
    %55 = arith.addf %54, %53 : vector<2x1024xf32>
    %56 = arith.mulf %55, %51 : vector<2x1024xf32>
    %cst_10 = arith.constant -3.5233877E-6 : f32
    %57 = vector.broadcast %cst_10 : f32 to vector<2x1024xf32>
    %58 = arith.addf %57, %56 : vector<2x1024xf32>
    %59 = arith.mulf %58, %51 : vector<2x1024xf32>
    %cst_11 = arith.constant -4.39150654E-6 : f32
    %60 = vector.broadcast %cst_11 : f32 to vector<2x1024xf32>
    %61 = arith.addf %60, %59 : vector<2x1024xf32>
    %62 = arith.mulf %61, %51 : vector<2x1024xf32>
    %cst_12 = arith.constant 2.1858087E-4 : f32
    %63 = vector.broadcast %cst_12 : f32 to vector<2x1024xf32>
    %64 = arith.addf %63, %62 : vector<2x1024xf32>
    %65 = arith.mulf %64, %51 : vector<2x1024xf32>
    %cst_13 = arith.constant -0.00125372503 : f32
    %66 = vector.broadcast %cst_13 : f32 to vector<2x1024xf32>
    %67 = arith.addf %66, %65 : vector<2x1024xf32>
    %68 = arith.mulf %67, %51 : vector<2x1024xf32>
    %cst_14 = arith.constant -0.00417768164 : f32
    %69 = vector.broadcast %cst_14 : f32 to vector<2x1024xf32>
    %70 = arith.addf %69, %68 : vector<2x1024xf32>
    %71 = arith.mulf %70, %51 : vector<2x1024xf32>
    %cst_15 = arith.constant 0.246640727 : f32
    %72 = vector.broadcast %cst_15 : f32 to vector<2x1024xf32>
    %73 = arith.addf %72, %71 : vector<2x1024xf32>
    %74 = arith.mulf %73, %51 : vector<2x1024xf32>
    %cst_16 = arith.constant 1.50140941 : f32
    %75 = vector.broadcast %cst_16 : f32 to vector<2x1024xf32>
    %76 = arith.addf %75, %74 : vector<2x1024xf32>
    %77 = math.sqrt %49 : vector<2x1024xf32>
    %cst_17 = arith.constant 3.000000e+00 : f32
    %78 = vector.broadcast %cst_17 : f32 to vector<2x1024xf32>
    %79 = arith.subf %77, %78 : vector<2x1024xf32>
    %cst_18 = arith.constant -2.00214257E-4 : f32
    %80 = vector.broadcast %cst_18 : f32 to vector<2x1024xf32>
    %81 = arith.mulf %80, %79 : vector<2x1024xf32>
    %cst_19 = arith.constant 1.00950558E-4 : f32
    %82 = vector.broadcast %cst_19 : f32 to vector<2x1024xf32>
    %83 = arith.addf %82, %81 : vector<2x1024xf32>
    %84 = arith.mulf %83, %79 : vector<2x1024xf32>
    %cst_20 = arith.constant 0.00134934322 : f32
    %85 = vector.broadcast %cst_20 : f32 to vector<2x1024xf32>
    %86 = arith.addf %85, %84 : vector<2x1024xf32>
    %87 = arith.mulf %86, %79 : vector<2x1024xf32>
    %cst_21 = arith.constant -0.00367342844 : f32
    %88 = vector.broadcast %cst_21 : f32 to vector<2x1024xf32>
    %89 = arith.addf %88, %87 : vector<2x1024xf32>
    %90 = arith.mulf %89, %79 : vector<2x1024xf32>
    %cst_22 = arith.constant 0.00573950773 : f32
    %91 = vector.broadcast %cst_22 : f32 to vector<2x1024xf32>
    %92 = arith.addf %91, %90 : vector<2x1024xf32>
    %93 = arith.mulf %92, %79 : vector<2x1024xf32>
    %cst_23 = arith.constant -0.0076224613 : f32
    %94 = vector.broadcast %cst_23 : f32 to vector<2x1024xf32>
    %95 = arith.addf %94, %93 : vector<2x1024xf32>
    %96 = arith.mulf %95, %79 : vector<2x1024xf32>
    %cst_24 = arith.constant 0.00943887047 : f32
    %97 = vector.broadcast %cst_24 : f32 to vector<2x1024xf32>
    %98 = arith.addf %97, %96 : vector<2x1024xf32>
    %99 = arith.mulf %98, %79 : vector<2x1024xf32>
    %cst_25 = arith.constant 1.00167406 : f32
    %100 = vector.broadcast %cst_25 : f32 to vector<2x1024xf32>
    %101 = arith.addf %100, %99 : vector<2x1024xf32>
    %102 = arith.mulf %101, %79 : vector<2x1024xf32>
    %cst_26 = arith.constant 2.83297682 : f32
    %103 = vector.broadcast %cst_26 : f32 to vector<2x1024xf32>
    %104 = arith.addf %103, %102 : vector<2x1024xf32>
    %cst_27 = arith.constant 5.000000e+00 : f32
    %105 = vector.broadcast %cst_27 : f32 to vector<2x1024xf32>
    %106 = arith.cmpf olt, %49, %105 : vector<2x1024xf32>
    %107 = arith.select %106, %76, %104 : vector<2x1024xi1>, vector<2x1024xf32>
    %108 = arith.mulf %107, %41 : vector<2x1024xf32>
    %cst_28 = arith.constant 1.41421354 : f32
    %109 = vector.broadcast %cst_28 : f32 to vector<2x1024xf32>
    %110 = arith.mulf %109, %108 : vector<2x1024xf32>
    %c0_29 = arith.constant 0 : index
    %c0_30 = arith.constant 0 : index
    %111 = vector.load %arg2[%c0_29, %c0_30] : memref<2x1024xf32, #tpu.memory_space<vmem>>, vector<2x1024xf32>
    %cst_31 = arith.constant 1.500000e-01 : f32
    %112 = vector.broadcast %cst_31 : f32 to vector<2x1024xf32>
    %113 = arith.mulf %112, %110 : vector<2x1024xf32>
    %114 = arith.addf %111, %113 : vector<2x1024xf32>
    %c0_32 = arith.constant 0 : index
    %c0_33 = arith.constant 0 : index
    %115 = vector.load %arg3[%c0_32, %c0_33] : memref<2x1024xf32, #tpu.memory_space<vmem>>, vector<2x1024xf32>
    tpu.vector_store %arg3[%c0_32, %c0_33], %114 {strides = array<i32>} : memref<2x1024xf32, #tpu.memory_space<vmem>>, vector<2x1024xf32>,
    return
  }
  func.func @transform_0(%arg0: i32) -> i32 {
    %c0_i32 = arith.constant 0 : i32
    %c0_i32_0 = arith.constant 0 : i32
    return %c0_i32 : i32
  }
  func.func @transform_1(%arg0: i32) -> (i32, i32) {
    %c0_i32 = arith.constant 0 : i32
    %c0_i32_0 = arith.constant 0 : i32
    return %arg0, %c0_i32 : i32, i32
  }
  func.func @transform_2(%arg0: i32) -> (i32, i32) {
    %c0_i32 = arith.constant 0 : i32
    %c0_i32_0 = arith.constant 0 : i32
    return %arg0, %c0_i32 : i32, i32
  }
}

</mosaic_0001>

<llo_original>
// kernel: tpu_custom_call.1
$region0: #{tpu_custom_call.1}
  #allocation0 [shape = 'u32[]', space=smem, size = 0x4, offset = 0x4, fixed_abs, tag = 'smem constant byte address 0x4 - core index']
  #allocation1 [shape = 'u32[144,128]{1,0:T(1,128)}', space=vmem, size = 0x12000, scoped, tag = 'internal scratch']
  #allocation2 [shape = 's32[1]{0:T(128)S(6)}', space=smem, size = 0x200, scoped, tag = 'scoped memory for tpu_custom_call.1']
  %s0 = inlined_call_operand.<no memory space> [shape: s32[1], index: 0, kind: input, shape index: {}]
  %s1 = inlined_call_operand.hbm [shape: f32[2,1024], index: 1, kind: input, shape index: {}]
  %s2 = inlined_call_operand.hbm [shape: f32[2,1024], index: 2, kind: output, shape index: {}]
  %s3 = sld [smem:[#allocation0]]
  $region22: #{tpu_custom_call.1} parent=0
    _
  %s5 = ssub.s32 1, %s3
  %s6 = scalar_select 0, %s5, %s3
  %7 = sst [smem:[#allocation2]] %s0
  $region1: #{tpu_custom_call.1} parent=0
    #allocation3 [shape = 'u8[8192]{0}', space=vmem, size = 0x2000, scoped, tag = 'input window, operand 1, single buffered']
    #allocation4 [shape = 's32[1]{0}', space=sflag, size = 0x4, scoped, tag = 'scoped memory for tpu_custom_call.1']
    #allocation5 [shape = 's32[1]{0}', space=sflag, size = 0x4, scoped, tag = 'scoped memory for tpu_custom_call.1']
    #allocation6 [shape = 'u8[8192]{0}', space=vmem, size = 0x2000, scoped, tag = 'output window, operand 0, single buffered']
    %8 = vsyncpa [#allocation4], 0
    %9 = vsyncpa [#allocation5], 0
    // Predicated region
    $region2: #{tpu_custom_call.1} parent=1 // pred_check
      _
    $region3: #{tpu_custom_call.1} parent=1 // pred_check_branch
      %11 = sbr.rel (0) target = $region5
    $region4: #{tpu_custom_call.1} parent=1 // pred_region
      _
    $region5: #{tpu_custom_call.1} parent=1 // pred_fallthru
      _
    // Predicated region
    $region6: #{tpu_custom_call.1} parent=1 // pred_check
      _
    $region7: #{tpu_custom_call.1} parent=1 // pred_check_branch
      %13 = sbr.rel (0) target = $region9
    $region8: #{tpu_custom_call.1} parent=1 // pred_region
      %s15 = ssub.s32 256, 256
      %16 = vsyncadd [#allocation4], %s15
      %s18 = sshll.u32 [#allocation3], 4
      %s19 = int_to_ptr.vmem [resolvable:$true] %s18
      %21 = dma.hbm_to_vmem [thread:$0]  %s1, 256, %s19, [#allocation4]
    $region9: #{tpu_custom_call.1} parent=1 // pred_fallthru
      _
    // Predicated region
    $region10: #{tpu_custom_call.1} parent=1 // pred_check
      _
    $region11: #{tpu_custom_call.1} parent=1 // pred_check_branch
      %23 = sbr.rel (0) target = $region13
    $region12: #{tpu_custom_call.1} parent=1 // pred_region
      %24 = dma.done [#allocation4], 256
    $region13: #{tpu_custom_call.1} parent=1 // pred_fallthru
      _
    %v25 = vlaneseq
    %v26 = vshrl.u32 %v25, 7
    %v27 = vlaneseq
    %v28 = vand.u32 %v27, 127
    %v29 = vadd.s32 %v28, 128
    %v30 = vadd.s32 %v28, 256
    %v31 = vadd.s32 %v28, 384
    %v32 = vadd.s32 %v28, 512
    %v33 = vadd.s32 %v28, 640
    %v34 = vadd.s32 %v28, 768
    %v35 = vadd.s32 %v28, 896
    %s36 = smul.u32 0, 2
    %v37 = vstv %s36
    %v38 = vadd.s32 %v37, %v26
    %v39 = vshll.u32 %v38, 10
    %v40 = vor.u32 %v39, %v28
    %v41 = vor.u32 %v39, %v29
    %v42 = vor.u32 %v39, %v30
    %v43 = vor.u32 %v39, %v31
    %v44 = vor.u32 %v39, %v32
    %v45 = vor.u32 %v39, %v33
    %v46 = vor.u32 %v39, %v34
    %v47 = vor.u32 %v39, %v35
    %s48 = sld [smem:[#allocation2]]
    %s49 = smul.u32 %s48, 2654435769
    %v50 = vstv %s49
    %v51 = vxor.u32 %v40, %v50
    %v52 = vxor.u32 %v41, %v50
    %v53 = vxor.u32 %v42, %v50
    %v54 = vxor.u32 %v43, %v50
    %v55 = vxor.u32 %v44, %v50
    %v56 = vxor.u32 %v45, %v50
    %v57 = vxor.u32 %v46, %v50
    %v58 = vxor.u32 %v47, %v50
    %v59 = vshra.s32 %v51, 16
    %v60 = vshra.s32 %v52, 16
    %v61 = vshra.s32 %v53, 16
    %v62 = vshra.s32 %v54, 16
    %v63 = vshra.s32 %v55, 16
    %v64 = vshra.s32 %v56, 16
    %v65 = vshra.s32 %v57, 16
    %v66 = vshra.s32 %v58, 16
    %v67 = vand.u32 %v59, 65535
    %v68 = vand.u32 %v60, 65535
    %v69 = vand.u32 %v61, 65535
    %v70 = vand.u32 %v62, 65535
    %v71 = vand.u32 %v63, 65535
    %v72 = vand.u32 %v64, 65535
    %v73 = vand.u32 %v65, 65535
    %v74 = vand.u32 %v66, 65535
    %v75 = vxor.u32 %v51, %v67
    %v76 = vxor.u32 %v52, %v68
    %v77 = vxor.u32 %v53, %v69
    %v78 = vxor.u32 %v54, %v70
    %v79 = vxor.u32 %v55, %v71
    %v80 = vxor.u32 %v56, %v72
    %v81 = vxor.u32 %v57, %v73
    %v82 = vxor.u32 %v58, %v74
    %v83 = vmul.u32 %v75, 2146121005
    %v84 = vmul.u32 %v76, 2146121005
    %v85 = vmul.u32 %v77, 2146121005
    %v86 = vmul.u32 %v78, 2146121005
    %v87 = vmul.u32 %v79, 2146121005
    %v88 = vmul.u32 %v80, 2146121005
    %v89 = vmul.u32 %v81, 2146121005
    %v90 = vmul.u32 %v82, 2146121005
    %v91 = vshra.s32 %v83, 15
    %v92 = vshra.s32 %v84, 15
    %v93 = vshra.s32 %v85, 15
    %v94 = vshra.s32 %v86, 15
    %v95 = vshra.s32 %v87, 15
    %v96 = vshra.s32 %v88, 15
    %v97 = vshra.s32 %v89, 15
    %v98 = vshra.s32 %v90, 15
    %v99 = vand.u32 %v91, 131071
    %v100 = vand.u32 %v92, 131071
    %v101 = vand.u32 %v93, 131071
    %v102 = vand.u32 %v94, 131071
    %v103 = vand.u32 %v95, 131071
    %v104 = vand.u32 %v96, 131071
    %v105 = vand.u32 %v97, 131071
    %v106 = vand.u32 %v98, 131071
    %v107 = vxor.u32 %v83, %v99
    %v108 = vxor.u32 %v84, %v100
    %v109 = vxor.u32 %v85, %v101
    %v110 = vxor.u32 %v86, %v102
    %v111 = vxor.u32 %v87, %v103
    %v112 = vxor.u32 %v88, %v104
    %v113 = vxor.u32 %v89, %v105
    %v114 = vxor.u32 %v90, %v106
    %v115 = vmul.u32 %v107, 2221713035
    %v116 = vmul.u32 %v108, 2221713035
    %v117 = vmul.u32 %v109, 2221713035
    %v118 = vmul.u32 %v110, 2221713035
    %v119 = vmul.u32 %v111, 2221713035
    %v120 = vmul.u32 %v112, 2221713035
    %v121 = vmul.u32 %v113, 2221713035
    %v122 = vmul.u32 %v114, 2221713035
    %v123 = vshra.s32 %v115, 16
    %v124 = vshra.s32 %v116, 16
    %v125 = vshra.s32 %v117, 16
    %v126 = vshra.s32 %v118, 16
    %v127 = vshra.s32 %v119, 16
    %v128 = vshra.s32 %v120, 16
    %v129 = vshra.s32 %v121, 16
    %v130 = vshra.s32 %v122, 16
    %v131 = vand.u32 %v123, 65535
    %v132 = vand.u32 %v124, 65535
    %v133 = vand.u32 %v125, 65535
    %v134 = vand.u32 %v126, 65535
    %v135 = vand.u32 %v127, 65535
    %v136 = vand.u32 %v128, 65535
    %v137 = vand.u32 %v129, 65535
    %v138 = vand.u32 %v130, 65535
    %v139 = vxor.u32 %v115, %v131
    %v140 = vxor.u32 %v116, %v132
    %v141 = vxor.u32 %v117, %v133
    %v142 = vxor.u32 %v118, %v134
    %v143 = vxor.u32 %v119, %v135
    %v144 = vxor.u32 %v120, %v136
    %v145 = vxor.u32 %v121, %v137
    %v146 = vxor.u32 %v122, %v138
    %v147 = vshra.s32 %v139, 8
    %v148 = vshra.s32 %v140, 8
    %v149 = vshra.s32 %v141, 8
    %v150 = vshra.s32 %v142, 8
    %v151 = vshra.s32 %v143, 8
    %v152 = vshra.s32 %v144, 8
    %v153 = vshra.s32 %v145, 8
    %v154 = vshra.s32 %v146, 8
    %v155 = vand.u32 %v147, 16777215
    %v156 = vand.u32 %v148, 16777215
    %v157 = vand.u32 %v149, 16777215
    %v158 = vand.u32 %v150, 16777215
    %v159 = vand.u32 %v151, 16777215
    %v160 = vand.u32 %v152, 16777215
    %v161 = vand.u32 %v153, 16777215
    %v162 = vand.u32 %v154, 16777215
    %v163 = vcvt.s32.f32 %v155
    %v164 = vcvt.s32.f32 %v156
    %v165 = vcvt.s32.f32 %v157
    %v166 = vcvt.s32.f32 %v158
    %v167 = vcvt.s32.f32 %v159
    %v168 = vcvt.s32.f32 %v160
    %v169 = vcvt.s32.f32 %v161
    %v170 = vcvt.s32.f32 %v162
    %v171 = vadd.f32 %v163, 0.5
    %v172 = vadd.f32 %v164, 0.5
    %v173 = vadd.f32 %v165, 0.5
    %v174 = vadd.f32 %v166, 0.5
    %v175 = vadd.f32 %v167, 0.5
    %v176 = vadd.f32 %v168, 0.5
    %v177 = vadd.f32 %v169, 0.5
    %v178 = vadd.f32 %v170, 0.5
    %v179 = vmul.f32 %v171, 1.1920929e-07
    %v180 = vmul.f32 %v172, 1.1920929e-07
    %v181 = vmul.f32 %v173, 1.1920929e-07
    %v182 = vmul.f32 %v174, 1.1920929e-07
    %v183 = vmul.f32 %v175, 1.1920929e-07
    %v184 = vmul.f32 %v176, 1.1920929e-07
    %v185 = vmul.f32 %v177, 1.1920929e-07
    %v186 = vmul.f32 %v178, 1.1920929e-07
    %v187 = vsub.f32 %v179, 1.0
    %v188 = vsub.f32 %v180, 1.0
    %v189 = vsub.f32 %v181, 1.0
    %v190 = vsub.f32 %v182, 1.0
    %v191 = vsub.f32 %v183, 1.0
    %v192 = vsub.f32 %v184, 1.0
    %v193 = vsub.f32 %v185, 1.0
    %v194 = vsub.f32 %v186, 1.0
    %v195 = vsub.f32 1.0, %v187
    %v196 = vsub.f32 1.0, %v188
    %v197 = vsub.f32 1.0, %v189
    %v198 = vsub.f32 1.0, %v190
    %v199 = vsub.f32 1.0, %v191
    %v200 = vsub.f32 1.0, %v192
    %v201 = vsub.f32 1.0, %v193
    %v202 = vsub.f32 1.0, %v194
    %v203 = vadd.f32 %v187, 1.0
    %v204 = vadd.f32 %v188, 1.0
    %v205 = vadd.f32 %v189, 1.0
    %v206 = vadd.f32 %v190, 1.0
    %v207 = vadd.f32 %v191, 1.0
    %v208 = vadd.f32 %v192, 1.0
    %v209 = vadd.f32 %v193, 1.0
    %v210 = vadd.f32 %v194, 1.0
    %v211 = vmul.f32 %v195, %v203
    %v212 = vmul.f32 %v196, %v204
    %v213 = vmul.f32 %v197, %v205
    %v214 = vmul.f32 %v198, %v206
    %v215 = vmul.f32 %v199, %v207
    %v216 = vmul.f32 %v200, %v208
    %v217 = vmul.f32 %v201, %v209
    %v218 = vmul.f32 %v202, %v210
    %v219 = vlog2.pop %v211
    %v220 = vmul.f32 %v219, 0.6931472
    %v221 = vlog2.pop %v212
    %v222 = vmul.f32 %v221, 0.6931472
    %v223 = vlog2.pop %v213
    %v224 = vmul.f32 %v223, 0.6931472
    %v225 = vlog2.pop %v214
    %v226 = vmul.f32 %v225, 0.6931472
    %v227 = vlog2.pop %v215
    %v228 = vmul.f32 %v227, 0.6931472
    %v229 = vlog2.pop %v216
    %v230 = vmul.f32 %v229, 0.6931472
    %v231 = vlog2.pop %v217
    %v232 = vmul.f32 %v231, 0.6931472
    %v233 = vlog2.pop %v218
    %v234 = vmul.f32 %v233, 0.6931472
    %v235 = vsub.f32 0.0, %v220
    %v236 = vsub.f32 0.0, %v222
    %v237 = vsub.f32 0.0, %v224
    %v238 = vsub.f32 0.0, %v226
    %v239 = vsub.f32 0.0, %v228
    %v240 = vsub.f32 0.0, %v230
    %v241 = vsub.f32 0.0, %v232
    %v242 = vsub.f32 0.0, %v234
    %v243 = vsub.f32 %v235, 2.5
    %v244 = vsub.f32 %v236, 2.5
    %v245 = vsub.f32 %v237, 2.5
    %v246 = vsub.f32 %v238, 2.5
    %v247 = vsub.f32 %v239, 2.5
    %v248 = vsub.f32 %v240, 2.5
    %v249 = vsub.f32 %v241, 2.5
    %v250 = vsub.f32 %v242, 2.5
    %v251 = vmul.f32 %v243, 2.8102264e-08
    %v252 = vmul.f32 %v244, 2.8102264e-08
    %v253 = vmul.f32 %v245, 2.8102264e-08
    %v254 = vmul.f32 %v246, 2.8102264e-08
    %v255 = vmul.f32 %v247, 2.8102264e-08
    %v256 = vmul.f32 %v248, 2.8102264e-08
    %v257 = vmul.f32 %v249, 2.8102264e-08
    %v258 = vmul.f32 %v250, 2.8102264e-08
    %v259 = vadd.f32 %v251, 3.4327394e-07
    %v260 = vadd.f32 %v252, 3.4327394e-07
    %v261 = vadd.f32 %v253, 3.4327394e-07
    %v262 = vadd.f32 %v254, 3.4327394e-07
    %v263 = vadd.f32 %v255, 3.4327394e-07
    %v264 = vadd.f32 %v256, 3.4327394e-07
    %v265 = vadd.f32 %v257, 3.4327394e-07
    %v266 = vadd.f32 %v258, 3.4327394e-07
    %v267 = vmul.f32 %v259, %v243
    %v268 = vmul.f32 %v260, %v244
    %v269 = vmul.f32 %v261, %v245
    %v270 = vmul.f32 %v262, %v246
    %v271 = vmul.f32 %v263, %v247
    %v272 = vmul.f32 %v264, %v248
    %v273 = vmul.f32 %v265, %v249
    %v274 = vmul.f32 %v266, %v250
    %v275 = vadd.f32 %v267, -3.5233877e-06
    %v276 = vadd.f32 %v268, -3.5233877e-06
    %v277 = vadd.f32 %v269, -3.5233877e-06
    %v278 = vadd.f32 %v270, -3.5233877e-06
    %v279 = vadd.f32 %v271, -3.5233877e-06
    %v280 = vadd.f32 %v272, -3.5233877e-06
    %v281 = vadd.f32 %v273, -3.5233877e-06
    %v282 = vadd.f32 %v274, -3.5233877e-06
    %v283 = vmul.f32 %v275, %v243
    %v284 = vmul.f32 %v276, %v244
    %v285 = vmul.f32 %v277, %v245
    %v286 = vmul.f32 %v278, %v246
    %v287 = vmul.f32 %v279, %v247
    %v288 = vmul.f32 %v280, %v248
    %v289 = vmul.f32 %v281, %v249
    %v290 = vmul.f32 %v282, %v250
    %v291 = vadd.f32 %v283, -4.3915065e-06
    %v292 = vadd.f32 %v284, -4.3915065e-06
    %v293 = vadd.f32 %v285, -4.3915065e-06
    %v294 = vadd.f32 %v286, -4.3915065e-06
    %v295 = vadd.f32 %v287, -4.3915065e-06
    %v296 = vadd.f32 %v288, -4.3915065e-06
    %v297 = vadd.f32 %v289, -4.3915065e-06
    %v298 = vadd.f32 %v290, -4.3915065e-06
    %v299 = vmul.f32 %v291, %v243
    %v300 = vmul.f32 %v292, %v244
    %v301 = vmul.f32 %v293, %v245
    %v302 = vmul.f32 %v294, %v246
    %v303 = vmul.f32 %v295, %v247
    %v304 = vmul.f32 %v296, %v248
    %v305 = vmul.f32 %v297, %v249
    %v306 = vmul.f32 %v298, %v250
    %v307 = vadd.f32 %v299, 0.00021858087
    %v308 = vadd.f32 %v300, 0.00021858087
    %v309 = vadd.f32 %v301, 0.00021858087
    %v310 = vadd.f32 %v302, 0.00021858087
    %v311 = vadd.f32 %v303, 0.00021858087
    %v312 = vadd.f32 %v304, 0.00021858087
    %v313 = vadd.f32 %v305, 0.00021858087
    %v314 = vadd.f32 %v306, 0.00021858087
    %v315 = vmul.f32 %v307, %v243
    %v316 = vmul.f32 %v308, %v244
    %v317 = vmul.f32 %v309, %v245
    %v318 = vmul.f32 %v310, %v246
    %v319 = vmul.f32 %v311, %v247
    %v320 = vmul.f32 %v312, %v248
    %v321 = vmul.f32 %v313, %v249
    %v322 = vmul.f32 %v314, %v250
    %v323 = vadd.f32 %v315, -0.001253725
    %v324 = vadd.f32 %v316, -0.001253725
    %v325 = vadd.f32 %v317, -0.001253725
    %v326 = vadd.f32 %v318, -0.001253725
    %v327 = vadd.f32 %v319, -0.001253725
    %v328 = vadd.f32 %v320, -0.001253725
    %v329 = vadd.f32 %v321, -0.001253725
    %v330 = vadd.f32 %v322, -0.001253725
    %v331 = vmul.f32 %v323, %v243
    %v332 = vmul.f32 %v324, %v244
    %v333 = vmul.f32 %v325, %v245
    %v334 = vmul.f32 %v326, %v246
    %v335 = vmul.f32 %v327, %v247
    %v336 = vmul.f32 %v328, %v248
    %v337 = vmul.f32 %v329, %v249
    %v338 = vmul.f32 %v330, %v250
    %v339 = vadd.f32 %v331, -0.0041776816
    %v340 = vadd.f32 %v332, -0.0041776816
    %v341 = vadd.f32 %v333, -0.0041776816
    %v342 = vadd.f32 %v334, -0.0041776816
    %v343 = vadd.f32 %v335, -0.0041776816
    %v344 = vadd.f32 %v336, -0.0041776816
    %v345 = vadd.f32 %v337, -0.0041776816
    %v346 = vadd.f32 %v338, -0.0041776816
    %v347 = vmul.f32 %v339, %v243
    %v348 = vmul.f32 %v340, %v244
    %v349 = vmul.f32 %v341, %v245
    %v350 = vmul.f32 %v342, %v246
    %v351 = vmul.f32 %v343, %v247
    %v352 = vmul.f32 %v344, %v248
    %v353 = vmul.f32 %v345, %v249
    %v354 = vmul.f32 %v346, %v250
    %v355 = vadd.f32 %v347, 0.24664073
    %v356 = vadd.f32 %v348, 0.24664073
    %v357 = vadd.f32 %v349, 0.24664073
    %v358 = vadd.f32 %v350, 0.24664073
    %v359 = vadd.f32 %v351, 0.24664073
    %v360 = vadd.f32 %v352, 0.24664073
    %v361 = vadd.f32 %v353, 0.24664073
    %v362 = vadd.f32 %v354, 0.24664073
    %v363 = vmul.f32 %v355, %v243
    %v364 = vmul.f32 %v356, %v244
    %v365 = vmul.f32 %v357, %v245
    %v366 = vmul.f32 %v358, %v246
    %v367 = vmul.f32 %v359, %v247
    %v368 = vmul.f32 %v360, %v248
    %v369 = vmul.f32 %v361, %v249
    %v370 = vmul.f32 %v362, %v250
    %v371 = vadd.f32 %v363, 1.5014094
    %v372 = vadd.f32 %v364, 1.5014094
    %v373 = vadd.f32 %v365, 1.5014094
    %v374 = vadd.f32 %v366, 1.5014094
    %v375 = vadd.f32 %v367, 1.5014094
    %v376 = vadd.f32 %v368, 1.5014094
    %v377 = vadd.f32 %v369, 1.5014094
    %v378 = vadd.f32 %v370, 1.5014094
    %v379 = vrsqrt.pop %v235
    %v380 = vmul.f32 %v235, %v379
    %vm381 = vcmp.eq.f32.partialorder %v235, inf
    %v382 = vsel %vm381, %v235, %v380
    %vm383 = vcmp.eq.f32.partialorder %v235, 0.0
    %v384 = vand.u32 %v235, 2147483648
    %v385 = vsel %vm383, %v384, %v382
    %v386 = vrsqrt.pop %v236
    %v387 = vmul.f32 %v236, %v386
    %vm388 = vcmp.eq.f32.partialorder %v236, inf
    %v389 = vsel %vm388, %v236, %v387
    %vm390 = vcmp.eq.f32.partialorder %v236, 0.0
    %v391 = vand.u32 %v236, 2147483648
    %v392 = vsel %vm390, %v391, %v389
    %v393 = vrsqrt.pop %v237
    %v394 = vmul.f32 %v237, %v393
    %vm395 = vcmp.eq.f32.partialorder %v237, inf
    %v396 = vsel %vm395, %v237, %v394
    %vm397 = vcmp.eq.f32.partialorder %v237, 0.0
    %v398 = vand.u32 %v237, 2147483648
    %v399 = vsel %vm397, %v398, %v396
    %v400 = vrsqrt.pop %v238
    %v401 = vmul.f32 %v238, %v400
    %vm402 = vcmp.eq.f32.partialorder %v238, inf
    %v403 = vsel %vm402, %v238, %v401
    %vm404 = vcmp.eq.f32.partialorder %v238, 0.0
    %v405 = vand.u32 %v238, 2147483648
    %v406 = vsel %vm404, %v405, %v403
    %v407 = vrsqrt.pop %v239
    %v408 = vmul.f32 %v239, %v407
    %vm409 = vcmp.eq.f32.partialorder %v239, inf
    %v410 = vsel %vm409, %v239, %v408
    %vm411 = vcmp.eq.f32.partialorder %v239, 0.0
    %v412 = vand.u32 %v239, 2147483648
    %v413 = vsel %vm411, %v412, %v410
    %v414 = vrsqrt.pop %v240
    %v415 = vmul.f32 %v240, %v414
    %vm416 = vcmp.eq.f32.partialorder %v240, inf
    %v417 = vsel %vm416, %v240, %v415
    %vm418 = vcmp.eq.f32.partialorder %v240, 0.0
    %v419 = vand.u32 %v240, 2147483648
    %v420 = vsel %vm418, %v419, %v417
    %v421 = vrsqrt.pop %v241
    %v422 = vmul.f32 %v241, %v421
    %vm423 = vcmp.eq.f32.partialorder %v241, inf
    %v424 = vsel %vm423, %v241, %v422
    %vm425 = vcmp.eq.f32.partialorder %v241, 0.0
    %v426 = vand.u32 %v241, 2147483648
    %v427 = vsel %vm425, %v426, %v424
    %v428 = vrsqrt.pop %v242
    %v429 = vmul.f32 %v242, %v428
    %vm430 = vcmp.eq.f32.partialorder %v242, inf
    %v431 = vsel %vm430, %v242, %v429
    %vm432 = vcmp.eq.f32.partialorder %v242, 0.0
    %v433 = vand.u32 %v242, 2147483648
    %v434 = vsel %vm432, %v433, %v431
    %v435 = vsub.f32 %v385, 3.0
    %v436 = vsub.f32 %v392, 3.0
    %v437 = vsub.f32 %v399, 3.0
    %v438 = vsub.f32 %v406, 3.0
    %v439 = vsub.f32 %v413, 3.0
    %v440 = vsub.f32 %v420, 3.0
    %v441 = vsub.f32 %v427, 3.0
    %v442 = vsub.f32 %v434, 3.0
    %v443 = vmul.f32 %v435, -0.00020021426
    %v444 = vmul.f32 %v436, -0.00020021426
    %v445 = vmul.f32 %v437, -0.00020021426
    %v446 = vmul.f32 %v438, -0.00020021426
    %v447 = vmul.f32 %v439, -0.00020021426
    %v448 = vmul.f32 %v440, -0.00020021426
    %v449 = vmul.f32 %v441, -0.00020021426
    %v450 = vmul.f32 %v442, -0.00020021426
    %v451 = vadd.f32 %v443, 0.00010095056
    %v452 = vadd.f32 %v444, 0.00010095056
    %v453 = vadd.f32 %v445, 0.00010095056
    %v454 = vadd.f32 %v446, 0.00010095056
    %v455 = vadd.f32 %v447, 0.00010095056
    %v456 = vadd.f32 %v448, 0.00010095056
    %v457 = vadd.f32 %v449, 0.00010095056
    %v458 = vadd.f32 %v450, 0.00010095056
    %v459 = vmul.f32 %v451, %v435
    %v460 = vmul.f32 %v452, %v436
    %v461 = vmul.f32 %v453, %v437
    %v462 = vmul.f32 %v454, %v438
    %v463 = vmul.f32 %v455, %v439
    %v464 = vmul.f32 %v456, %v440
    %v465 = vmul.f32 %v457, %v441
    %v466 = vmul.f32 %v458, %v442
    %v467 = vadd.f32 %v459, 0.0013493432
    %v468 = vadd.f32 %v460, 0.0013493432
    %v469 = vadd.f32 %v461, 0.0013493432
    %v470 = vadd.f32 %v462, 0.0013493432
    %v471 = vadd.f32 %v463, 0.0013493432
    %v472 = vadd.f32 %v464, 0.0013493432
    %v473 = vadd.f32 %v465, 0.0013493432
    %v474 = vadd.f32 %v466, 0.0013493432
    %v475 = vmul.f32 %v467, %v435
    %v476 = vmul.f32 %v468, %v436
    %v477 = vmul.f32 %v469, %v437
    %v478 = vmul.f32 %v470, %v438
    %v479 = vmul.f32 %v471, %v439
    %v480 = vmul.f32 %v472, %v440
    %v481 = vmul.f32 %v473, %v441
    %v482 = vmul.f32 %v474, %v442
    %v483 = vadd.f32 %v475, -0.0036734284
    %v484 = vadd.f32 %v476, -0.0036734284
    %v485 = vadd.f32 %v477, -0.0036734284
    %v486 = vadd.f32 %v478, -0.0036734284
    %v487 = vadd.f32 %v479, -0.0036734284
    %v488 = vadd.f32 %v480, -0.0036734284
    %v489 = vadd.f32 %v481, -0.0036734284
    %v490 = vadd.f32 %v482, -0.0036734284
    %v491 = vmul.f32 %v483, %v435
    %v492 = vmul.f32 %v484, %v436
    %v493 = vmul.f32 %v485, %v437
    %v494 = vmul.f32 %v486, %v438
    %v495 = vmul.f32 %v487, %v439
    %v496 = vmul.f32 %v488, %v440
    %v497 = vmul.f32 %v489, %v441
    %v498 = vmul.f32 %v490, %v442
    %v499 = vadd.f32 %v491, 0.0057395077
    %v500 = vadd.f32 %v492, 0.0057395077
    %v501 = vadd.f32 %v493, 0.0057395077
    %v502 = vadd.f32 %v494, 0.0057395077
    %v503 = vadd.f32 %v495, 0.0057395077
    %v504 = vadd.f32 %v496, 0.0057395077
    %v505 = vadd.f32 %v497, 0.0057395077
    %v506 = vadd.f32 %v498, 0.0057395077
    %v507 = vmul.f32 %v499, %v435
    %v508 = vmul.f32 %v500, %v436
    %v509 = vmul.f32 %v501, %v437
    %v510 = vmul.f32 %v502, %v438
    %v511 = vmul.f32 %v503, %v439
    %v512 = vmul.f32 %v504, %v440
    %v513 = vmul.f32 %v505, %v441
    %v514 = vmul.f32 %v506, %v442
    %v515 = vadd.f32 %v507, -0.0076224613
    %v516 = vadd.f32 %v508, -0.0076224613
    %v517 = vadd.f32 %v509, -0.0076224613
    %v518 = vadd.f32 %v510, -0.0076224613
    %v519 = vadd.f32 %v511, -0.0076224613
    %v520 = vadd.f32 %v512, -0.0076224613
    %v521 = vadd.f32 %v513, -0.0076224613
    %v522 = vadd.f32 %v514, -0.0076224613
    %v523 = vmul.f32 %v515, %v435
    %v524 = vmul.f32 %v516, %v436
    %v525 = vmul.f32 %v517, %v437
    %v526 = vmul.f32 %v518, %v438
    %v527 = vmul.f32 %v519, %v439
    %v528 = vmul.f32 %v520, %v440
    %v529 = vmul.f32 %v521, %v441
    %v530 = vmul.f32 %v522, %v442
    %v531 = vadd.f32 %v523, 0.0094388705
    %v532 = vadd.f32 %v524, 0.0094388705
    %v533 = vadd.f32 %v525, 0.0094388705
    %v534 = vadd.f32 %v526, 0.0094388705
    %v535 = vadd.f32 %v527, 0.0094388705
    %v536 = vadd.f32 %v528, 0.0094388705
    %v537 = vadd.f32 %v529, 0.0094388705
    %v538 = vadd.f32 %v530, 0.0094388705
    %v539 = vmul.f32 %v531, %v435
    %v540 = vmul.f32 %v532, %v436
    %v541 = vmul.f32 %v533, %v437
    %v542 = vmul.f32 %v534, %v438
    %v543 = vmul.f32 %v535, %v439
    %v544 = vmul.f32 %v536, %v440
    %v545 = vmul.f32 %v537, %v441
    %v546 = vmul.f32 %v538, %v442
    %v547 = vadd.f32 %v539, 1.001674
    %v548 = vadd.f32 %v540, 1.001674
    %v549 = vadd.f32 %v541, 1.001674
    %v550 = vadd.f32 %v542, 1.001674
    %v551 = vadd.f32 %v543, 1.001674
    %v552 = vadd.f32 %v544, 1.001674
    %v553 = vadd.f32 %v545, 1.001674
    %v554 = vadd.f32 %v546, 1.001674
    %v555 = vmul.f32 %v547, %v435
    %v556 = vmul.f32 %v548, %v436
    %v557 = vmul.f32 %v549, %v437
    %v558 = vmul.f32 %v550, %v438
    %v559 = vmul.f32 %v551, %v439
    %v560 = vmul.f32 %v552, %v440
    %v561 = vmul.f32 %v553, %v441
    %v562 = vmul.f32 %v554, %v442
    %v563 = vadd.f32 %v555, 2.8329768
    %v564 = vadd.f32 %v556, 2.8329768
    %v565 = vadd.f32 %v557, 2.8329768
    %v566 = vadd.f32 %v558, 2.8329768
    %v567 = vadd.f32 %v559, 2.8329768
    %v568 = vadd.f32 %v560, 2.8329768
    %v569 = vadd.f32 %v561, 2.8329768
    %v570 = vadd.f32 %v562, 2.8329768
    %vm571 = vcmp.lt.f32.partialorder %v235, 5.0
    %vm572 = vcmp.lt.f32.partialorder %v236, 5.0
    %vm573 = vcmp.lt.f32.partialorder %v237, 5.0
    %vm574 = vcmp.lt.f32.partialorder %v238, 5.0
    %vm575 = vcmp.lt.f32.partialorder %v239, 5.0
    %vm576 = vcmp.lt.f32.partialorder %v240, 5.0
    %vm577 = vcmp.lt.f32.partialorder %v241, 5.0
    %vm578 = vcmp.lt.f32.partialorder %v242, 5.0
    %v579 = vsel %vm571, %v371, %v563
    %v580 = vsel %vm572, %v372, %v564
    %v581 = vsel %vm573, %v373, %v565
    %v582 = vsel %vm574, %v374, %v566
    %v583 = vsel %vm575, %v375, %v567
    %v584 = vsel %vm576, %v376, %v568
    %v585 = vsel %vm577, %v377, %v569
    %v586 = vsel %vm578, %v378, %v570
    %v587 = vmul.f32 %v579, %v187
    %v588 = vmul.f32 %v580, %v188
    %v589 = vmul.f32 %v581, %v189
    %v590 = vmul.f32 %v582, %v190
    %v591 = vmul.f32 %v583, %v191
    %v592 = vmul.f32 %v584, %v192
    %v593 = vmul.f32 %v585, %v193
    %v594 = vmul.f32 %v586, %v194
    %v595 = vmul.f32 %v587, 1.4142135
    %v596 = vmul.f32 %v588, 1.4142135
    %v597 = vmul.f32 %v589, 1.4142135
    %v598 = vmul.f32 %v590, 1.4142135
    %v599 = vmul.f32 %v591, 1.4142135
    %v600 = vmul.f32 %v592, 1.4142135
    %v601 = vmul.f32 %v593, 1.4142135
    %v602 = vmul.f32 %v594, 1.4142135
    %v603 = vld [vmem:[#allocation3] sm:$0xff]
    %v604 = vld [vmem:[#allocation3 + $0x8] sm:$0xff]
    %v605 = vmul.f32 %v595, 0.15
    %v606 = vmul.f32 %v596, 0.15
    %v607 = vmul.f32 %v597, 0.15
    %v608 = vmul.f32 %v598, 0.15
    %v609 = vmul.f32 %v599, 0.15
    %v610 = vmul.f32 %v600, 0.15
    %v611 = vmul.f32 %v601, 0.15
    %v612 = vmul.f32 %v602, 0.15
    %v621 = vcombine.low %v605, %v606
    %v622 = vcombine.low %v607, %v608
    %v624 = vunpack.c.l.s4 1983009808
    %v625 = vunpack.c.0.s8 %v624
    %v626 = vlaneseq
    %v627 = vshrl.u32 %v626, 7
    %v628 = vsub.s32 %v625, %v627
    %v629 = vrot.slane %v621, %v628
    %v631 = vunpack.c.l.s4 1983009808
    %v632 = vunpack.c.0.s8 %v631
    %v633 = vlaneseq
    %v634 = vshrl.u32 %v633, 7
    %v635 = vsub.s32 %v632, %v634
    %v636 = vrot.slane %v622, %v635
    %v637 = vcombine.low %v629, %v636
    %v638 = vcombine.low %v609, %v610
    %v639 = vcombine.low %v611, %v612
    %v641 = vunpack.c.l.s4 1983009808
    %v642 = vunpack.c.0.s8 %v641
    %v643 = vlaneseq
    %v644 = vshrl.u32 %v643, 7
    %v645 = vsub.s32 %v642, %v644
    %v646 = vrot.slane %v638, %v645
    %v648 = vunpack.c.l.s4 1983009808
    %v649 = vunpack.c.0.s8 %v648
    %v650 = vlaneseq
    %v651 = vshrl.u32 %v650, 7
    %v652 = vsub.s32 %v649, %v651
    %v653 = vrot.slane %v639, %v652
    %v654 = vcombine.low %v646, %v653
    %v657 = vadd.f32 %v603, %v637
    %v658 = vadd.f32 %v604, %v654
    %659 = vst [vmem:[#allocation6] sm:$0xff] %v657
    %660 = vst [vmem:[#allocation6 + $0x8] sm:$0xff] %v658
    // Predicated region
    $region14: #{tpu_custom_call.1} parent=1 // pred_check
      _
    $region15: #{tpu_custom_call.1} parent=1 // pred_check_branch
      %662 = sbr.rel (0) target = $region17
    $region16: #{tpu_custom_call.1} parent=1 // pred_region
      %s664 = ssub.s32 256, 256
      %665 = vsyncadd [#allocation5], %s664
      %s667 = sshll.u32 [#allocation6], 4
      %s668 = int_to_ptr.vmem [resolvable:$true] %s667
      %670 = dma.vmem_to_hbm [thread:$0]  %s668, 256, %s2, [#allocation5]
    $region17: #{tpu_custom_call.1} parent=1 // pred_fallthru
      _
    // Predicated region
    $region18: #{tpu_custom_call.1} parent=1 // pred_check
      _
    $region19: #{tpu_custom_call.1} parent=1 // pred_check_branch
      %672 = sbr.rel (0) target = $region21
    $region20: #{tpu_custom_call.1} parent=1 // pred_region
      %673 = dma.done [#allocation5], 256
    $region21: #{tpu_custom_call.1} parent=1 // pred_fallthru
      _
    %674 = vsyncpa [#allocation4], 1
    %675 = vsyncpa [#allocation5], 1

</llo_original>
